<compile_context>
chip_gen: v6e
topology: v6e:2x2x1
jax: 0.10.0
libtpu: 0.0.40
codegen_flags: <defaults>
</compile_context>

<pallas_src>
import jax
import jax.numpy as jnp
from jax.experimental import pallas as pl
from jax.experimental.pallas import tpu as pltpu


def lstm_recurrence_kernel(gates_ref, mask_ref, whh_ref, c_out_ref):
    """LSTM recurrence over T steps for one batch tile.

    gates_ref : (T, TB, 4H) f32       precomputed input-side gate pre-activations [i|f|g|o]
    mask_ref  : (T, TB, 1)  f32       1.0 while t < q_len[b], else 0.0 (freeze state)
    whh_ref   : (H, 4H)     f32/bf16  fused hidden->gate weights [i|f|g|o]
    c_out_ref : (TB, H)     f32       final cell state
    """
    T, TB, H4 = gates_ref.shape
    H = H4 // 4

    # Hoisted out of the serial chain: weights + per-lane scale/offset constants that
    # implement the single-sigmoid gate nonlinearity (tanh(x) = 2*sigmoid(2x) - 1 on
    # the g lanes, plain sigmoid elsewhere).
    whh = whh_ref[...]                                               # (H, 4H)
    lane = jax.lax.broadcasted_iota(jnp.int32, (1, H4), 1)
    is_g = jnp.logical_and(lane >= 2 * H, lane < 3 * H)
    gate_scale = jnp.where(is_g, 2.0, 1.0).astype(jnp.float32)       # (1, 4H)
    gate_off = jnp.where(is_g, -1.0, 0.0).astype(jnp.float32)        # (1, 4H)

    def step(t, carry):
        h, c = carry
        # ONE fused MXU matmul per step -> (TB, 4H) gate block, 128-lane dense.
        g_pre = gates_ref[t] + jnp.dot(
            h.astype(whh.dtype), whh, preferred_element_type=jnp.float32)
        # ONE EUP pass over the whole block; g lanes fixed up on the VPU.
        s = jax.nn.sigmoid(g_pre * gate_scale)
        acts = s * gate_scale + gate_off
        i_g = acts[:, 0 * H:1 * H]
        f_g = acts[:, 1 * H:2 * H]
        g_g = acts[:, 2 * H:3 * H]
        o_g = acts[:, 3 * H:4 * H]
        c_new = f_g * c + i_g * g_g
        h_new = o_g * jnp.tanh(c_new)
        # packed-sequence semantics: freeze state once t >= q_len[b]; the mask is a
        # preloaded (TB,1) vector, off the MXU/EUP dependency chain.
        m = mask_ref[t] > 0.0
        return jnp.where(m, h_new, h), jnp.where(m, c_new, c)

    h0 = jnp.zeros((TB, H), jnp.float32)
    c0 = jnp.zeros((TB, H), jnp.float32)
    _, c_fin = jax.lax.fori_loop(0, T, step, (h0, c0), unroll=True)
    c_out_ref[...] = c_fin


def text_processor_forward(q, q_len, emb_w, w_ih, w_hh, *,
                           matmul_dtype=jnp.bfloat16, batch_tile=8):
    """q: (B, T) int32 tokens; q_len: (B,) int32 lengths (descending, as pack requires);
    emb_w: (tokens, F) with row 0 = padding row; w_ih: (4H, F); w_hh: (4H, H), gate
    order (i, f, g, o) as in PyTorch. Returns final LSTM cell state (B, H) float32."""
    B, T = q.shape
    H = w_hh.shape[1]
    H4 = 4 * H
    assert batch_tile % 8 == 0
    Bp = ((B + batch_tile - 1) // batch_tile) * batch_tile

    # --- Weight prep (cached under jit in real use): fused token -> gate table. ---
    # Exact because dropout p=0 and gather commutes with tanh / the row-wise matmul.
    gate_table = jnp.tanh(emb_w.astype(jnp.float32)) @ w_ih.T.astype(jnp.float32)  # (tokens, 4H)

    # Glue (XLA): gather per-token gate rows, time-major transpose, pad batch to 8-multiple.
    gates_seq = jnp.take(gate_table, q, axis=0)                      # (B, T, 4H)
    gates_seq = jnp.transpose(gates_seq, (1, 0, 2))                  # (T, B, 4H)
    gates_seq = jnp.pad(gates_seq, ((0, 0), (0, Bp - B), (0, 0)))    # (T, Bp, 4H)

    # Precomputed freeze masks for ALL timesteps; padded batch rows get length 0.
    lens = jnp.pad(q_len.astype(jnp.int32), (0, Bp - B))             # (Bp,)
    masks = (jnp.arange(T, dtype=jnp.int32)[:, None] < lens[None, :]).astype(jnp.float32)
    masks = masks[:, :, None]                                        # (T, Bp, 1)

    # Fuse the 4 hidden->gate matrices; bf16 operands by default (all generations).
    whh_f = w_hh.T.astype(matmul_dtype)                              # (H, 4H)

    c = pl.pallas_call(
        lstm_recurrence_kernel,
        out_shape=jax.ShapeDtypeStruct((Bp, H), jnp.float32),
        grid=(Bp // batch_tile,),
        in_specs=[
            pl.BlockSpec((T, batch_tile, H4), lambda i: (0, i, 0)),
            pl.BlockSpec((T, batch_tile, 1), lambda i: (0, i, 0)),
            pl.BlockSpec((H, H4), lambda i: (0, 0)),
        ],
        out_specs=pl.BlockSpec((batch_tile, H), lambda i: (i, 0)),
        compiler_params=pltpu.CompilerParams(
            dimension_semantics=("parallel",)),
    )(gates_seq, masks, whh_f)
    return c[:B]


def reference_forward(q, q_len, emb_w, w_ih, w_hh):
    """Pure-JAX reference with the module's math (for a correctness check)."""
    x = jnp.tanh(jnp.take(emb_w, q, axis=0))          # (B, T, F)
    B, T, _ = x.shape
    H = w_hh.shape[1]

    def step(carry, t):
        h, c = carry
        gates = x[:, t, :] @ w_ih.T + h @ w_hh.T      # (B, 4H)
        i = jax.nn.sigmoid(gates[:, 0:H])
        f = jax.nn.sigmoid(gates[:, H:2 * H])
        g = jnp.tanh(gates[:, 2 * H:3 * H])
        o = jax.nn.sigmoid(gates[:, 3 * H:4 * H])
        c_new = f * c + i * g
        h_new = o * jnp.tanh(c_new)
        mask = (t < q_len)[:, None]
        return (jnp.where(mask, h_new, h), jnp.where(mask, c_new, c)), None

    init = (jnp.zeros((B, H), jnp.float32), jnp.zeros((B, H), jnp.float32))
    (_, c), _ = jax.lax.scan(step, init, jnp.arange(T))
    return c


def xavier_uniform(key, shape):
    fan_out, fan_in = shape
    bound = (6.0 / (fan_in + fan_out)) ** 0.5
    return jax.random.uniform(key, shape, jnp.float32, -bound, bound)


if __name__ == "__main__":
    # Small shapes implied by the module: tokens=50, features=32, lstm_features=32
    tokens, F, H = 50, 32, 32
    B, T = 4, 8

    root = jax.random.PRNGKey(0)
    k_emb, k_ih, k_hh, k_q = jax.random.split(root, 4)

    # Deterministic parameter init (shapes from __init__; xavier-uniform per gate chunk;
    # embedding padding_idx=0 -> row 0 zeroed; LSTM biases zeroed in __init__ -> omitted).
    emb_w = xavier_uniform(k_emb, (tokens, F)).at[0].set(0.0)
    w_ih = jnp.concatenate(
        [xavier_uniform(k, (H, F)) for k in jax.random.split(k_ih, 4)], axis=0)  # (4H, F)
    w_hh = jnp.concatenate(
        [xavier_uniform(k, (H, H)) for k in jax.random.split(k_hh, 4)], axis=0)  # (4H, H)

    # Inputs: token ids and descending lengths (pack_padded_sequence enforce_sorted=True).
    q = jax.random.randint(k_q, (B, T), 1, tokens, dtype=jnp.int32)
    q_len = jnp.array([8, 6, 5, 3], dtype=jnp.int32)

    ref = reference_forward(q, q_len, emb_w, w_ih, w_hh)

    # f32 matmul path — tight vs reference (only ulp-level diff from the single-sigmoid
    # tanh reconstruction on the g lanes).
    out_f32 = jax.block_until_ready(
        text_processor_forward(q, q_len, emb_w, w_ih, w_hh, matmul_dtype=jnp.float32))
    assert out_f32.shape == (B, H)
    assert jnp.allclose(out_f32, ref, atol=3e-5, rtol=3e-5), "f32 kernel mismatch vs reference"

    # Default path: bf16 MXU operands (all generations); state/elementwise stay f32.
    out_bf16 = jax.block_until_ready(text_processor_forward(q, q_len, emb_w, w_ih, w_hh))
    assert out_bf16.shape == (B, H)
    assert jnp.allclose(out_bf16, ref, atol=5e-2, rtol=5e-2), "bf16 kernel mismatch vs reference"

    print("KERNEL_OK")
</pallas_src>

<mosaic_0001>
module attributes {stable_mosaic.version = 11 : i64} {
  func.func @lstm_recurrence_kernel(%arg0: i32, %arg1: memref<8x8x128xf32, #tpu.memory_space<vmem>>, %arg2: memref<8x8x1xf32, #tpu.memory_space<vmem>>, %arg3: memref<32x128xf32, #tpu.memory_space<vmem>>, %arg4: memref<8x32xf32, #tpu.memory_space<vmem>>) attributes {dimension_semantics = [#tpu.dimension_semantics<parallel>], iteration_bounds = array<i64: 1>, scalar_prefetch = 0 : i64, scratch_operands = 0 : i64, tpu.core_type = #tpu.core_type<tc>, window_params = [{transform_indices = @transform_0, window_bounds = array<i64: 8, 8, 128>}, {transform_indices = @transform_1, window_bounds = array<i64: 8, 8, 1>}, {pipeline_mode = #tpu.pipeline_mode<synchronous>, transform_indices = @transform_2, window_bounds = array<i64: 32, 128>}, {transform_indices = @transform_3, window_bounds = array<i64: 8, 32>}]} {
    %c0 = arith.constant 0 : index
    %c0_0 = arith.constant 0 : index
    %0 = vector.load %arg3[%c0, %c0_0] : memref<32x128xf32, #tpu.memory_space<vmem>>, vector<32x128xf32>
    %1 = tpu.iota {dimensions = array<i32: 1>} : vector<1x128xi32>
    %c64_i32 = arith.constant 64 : i32
    %2 = vector.broadcast %c64_i32 : i32 to vector<1x128xi32>
    %3 = arith.cmpi sge, %1, %2 : vector<1x128xi32>
    %c96_i32 = arith.constant 96 : i32
    %4 = vector.broadcast %c96_i32 : i32 to vector<1x128xi32>
    %5 = arith.cmpi slt, %1, %4 : vector<1x128xi32>
    %6 = arith.andi %3, %5 : vector<1x128xi1>
    %cst = arith.constant 2.000000e+00 : f32
    %cst_1 = arith.constant 1.000000e+00 : f32
    %7 = vector.broadcast %cst : f32 to vector<1x128xf32>
    %8 = vector.broadcast %cst_1 : f32 to vector<1x128xf32>
    %9 = arith.select %6, %7, %8 : vector<1x128xi1>, vector<1x128xf32>
    %cst_2 = arith.constant -1.000000e+00 : f32
    %cst_3 = arith.constant 0.000000e+00 : f32
    %10 = vector.broadcast %cst_2 : f32 to vector<1x128xf32>
    %11 = vector.broadcast %cst_3 : f32 to vector<1x128xf32>
    %12 = arith.select %6, %10, %11 : vector<1x128xi1>, vector<1x128xf32>
    %cst_4 = arith.constant 0.000000e+00 : f32
    %13 = vector.broadcast %cst_4 : f32 to vector<8x32xf32>
    %cst_5 = arith.constant 0.000000e+00 : f32
    %14 = vector.broadcast %cst_5 : f32 to vector<8x32xf32>
    %c0_i32 = arith.constant 0 : i32
    %15 = arith.index_cast %c0_i32 : i32 to index
    %c0_6 = arith.constant 0 : index
    %c0_7 = arith.constant 0 : index
    %16 = vector.load %arg1[%15, %c0_6, %c0_7] : memref<8x8x128xf32, #tpu.memory_space<vmem>>, vector<1x8x128xf32>
    %17 = vector.shape_cast %16 : vector<1x8x128xf32> to vector<8x128xf32>
    %cst_8 = arith.constant dense<0.000000e+00> : vector<8x128xf32>
    %18 = tpu.matmul %13, %0, %cst_8 {dimension_numbers = #tpu.dot_dimension_numbers<[1], [0], [0], [1], [0, 0, 1, 1], [], []>} : vector<8x32xf32>, vector<32x128xf32>, vector<8x128xf32> -> vector<8x128xf32>
    %19 = arith.addf %17, %18 : vector<8x128xf32>
    %20 = vector.broadcast %9 : vector<1x128xf32> to vector<8x128xf32>
    %21 = arith.mulf %19, %20 : vector<8x128xf32>
    %22 = arith.negf %21 : vector<8x128xf32>
    %23 = math.exp %22 : vector<8x128xf32>
    %cst_9 = arith.constant 1.000000e+00 : f32
    %24 = vector.broadcast %cst_9 : f32 to vector<8x128xf32>
    %25 = arith.addf %24, %23 : vector<8x128xf32>
    %26 = arith.divf %24, %25 : vector<8x128xf32>
    %27 = vector.broadcast %9 : vector<1x128xf32> to vector<8x128xf32>
    %28 = arith.mulf %26, %27 : vector<8x128xf32>
    %29 = vector.broadcast %12 : vector<1x128xf32> to vector<8x128xf32>
    %30 = arith.addf %28, %29 : vector<8x128xf32>
    %31 = vector.extract_strided_slice %30 {offsets = [0, 0], sizes = [8, 32], strides = [1, 1]} : vector<8x128xf32> to vector<8x32xf32>
    %32 = vector.extract_strided_slice %30 {offsets = [0, 32], sizes = [8, 32], strides = [1, 1]} : vector<8x128xf32> to vector<8x32xf32>
    %33 = vector.extract_strided_slice %30 {offsets = [0, 64], sizes = [8, 32], strides = [1, 1]} : vector<8x128xf32> to vector<8x32xf32>
    %34 = vector.extract_strided_slice %30 {offsets = [0, 96], sizes = [8, 32], strides = [1, 1]} : vector<8x128xf32> to vector<8x32xf32>
    %35 = arith.mulf %32, %14 : vector<8x32xf32>
    %36 = arith.mulf %31, %33 : vector<8x32xf32>
    %37 = arith.addf %35, %36 : vector<8x32xf32>
    %38 = math.tanh %37 : vector<8x32xf32>
    %39 = arith.mulf %34, %38 : vector<8x32xf32>
    %40 = arith.index_cast %c0_i32 : i32 to index
    %c0_10 = arith.constant 0 : index
    %c0_11 = arith.constant 0 : index
    %41 = vector.load %arg2[%40, %c0_10, %c0_11] : memref<8x8x1xf32, #tpu.memory_space<vmem>>, vector<1x8x1xf32>
    %42 = vector.shape_cast %41 : vector<1x8x1xf32> to vector<8x1xf32>
    %cst_12 = arith.constant 0.000000e+00 : f32
    %43 = vector.broadcast %cst_12 : f32 to vector<8x1xf32>
    %44 = arith.cmpf ogt, %42, %43 : vector<8x1xf32>
    %45 = vector.shape_cast %44 : vector<8x1xi1> to vector<8x1xi1>
    %46 = vector.broadcast %45 : vector<8x1xi1> to vector<8x32xi1>
    %47 = arith.select %46, %39, %13 : vector<8x32xi1>, vector<8x32xf32>
    %48 = vector.shape_cast %44 : vector<8x1xi1> to vector<8x1xi1>
    %49 = vector.broadcast %48 : vector<8x1xi1> to vector<8x32xi1>
    %50 = arith.select %49, %37, %14 : vector<8x32xi1>, vector<8x32xf32>
    %c1_i32 = arith.constant 1 : i32
    %51 = arith.index_cast %c1_i32 : i32 to index
    %c0_13 = arith.constant 0 : index
    %c0_14 = arith.constant 0 : index
    %52 = vector.load %arg1[%51, %c0_13, %c0_14] : memref<8x8x128xf32, #tpu.memory_space<vmem>>, vector<1x8x128xf32>
    %53 = vector.shape_cast %52 : vector<1x8x128xf32> to vector<8x128xf32>
    %cst_15 = arith.constant dense<0.000000e+00> : vector<8x128xf32>
    %54 = tpu.matmul %47, %0, %cst_15 {dimension_numbers = #tpu.dot_dimension_numbers<[1], [0], [0], [1], [0, 0, 1, 1], [], []>} : vector<8x32xf32>, vector<32x128xf32>, vector<8x128xf32> -> vector<8x128xf32>
    %55 = arith.addf %53, %54 : vector<8x128xf32>
    %56 = vector.broadcast %9 : vector<1x128xf32> to vector<8x128xf32>
    %57 = arith.mulf %55, %56 : vector<8x128xf32>
    %58 = arith.negf %57 : vector<8x128xf32>
    %59 = math.exp %58 : vector<8x128xf32>
    %cst_16 = arith.constant 1.000000e+00 : f32
    %60 = vector.broadcast %cst_16 : f32 to vector<8x128xf32>
    %61 = arith.addf %60, %59 : vector<8x128xf32>
    %62 = arith.divf %60, %61 : vector<8x128xf32>
    %63 = vector.broadcast %9 : vector<1x128xf32> to vector<8x128xf32>
    %64 = arith.mulf %62, %63 : vector<8x128xf32>
    %65 = vector.broadcast %12 : vector<1x128xf32> to vector<8x128xf32>
    %66 = arith.addf %64, %65 : vector<8x128xf32>
    %67 = vector.extract_strided_slice %66 {offsets = [0, 0], sizes = [8, 32], strides = [1, 1]} : vector<8x128xf32> to vector<8x32xf32>
    %68 = vector.extract_strided_slice %66 {offsets = [0, 32], sizes = [8, 32], strides = [1, 1]} : vector<8x128xf32> to vector<8x32xf32>
    %69 = vector.extract_strided_slice %66 {offsets = [0, 64], sizes = [8, 32], strides = [1, 1]} : vector<8x128xf32> to vector<8x32xf32>
    %70 = vector.extract_strided_slice %66 {offsets = [0, 96], sizes = [8, 32], strides = [1, 1]} : vector<8x128xf32> to vector<8x32xf32>
    %71 = arith.mulf %68, %50 : vector<8x32xf32>
    %72 = arith.mulf %67, %69 : vector<8x32xf32>
    %73 = arith.addf %71, %72 : vector<8x32xf32>
    %74 = math.tanh %73 : vector<8x32xf32>
    %75 = arith.mulf %70, %74 : vector<8x32xf32>
    %76 = arith.index_cast %c1_i32 : i32 to index
    %c0_17 = arith.constant 0 : index
    %c0_18 = arith.constant 0 : index
    %77 = vector.load %arg2[%76, %c0_17, %c0_18] : memref<8x8x1xf32, #tpu.memory_space<vmem>>, vector<1x8x1xf32>
    %78 = vector.shape_cast %77 : vector<1x8x1xf32> to vector<8x1xf32>
    %cst_19 = arith.constant 0.000000e+00 : f32
    %79 = vector.broadcast %cst_19 : f32 to vector<8x1xf32>
    %80 = arith.cmpf ogt, %78, %79 : vector<8x1xf32>
    %81 = vector.shape_cast %80 : vector<8x1xi1> to vector<8x1xi1>
    %82 = vector.broadcast %81 : vector<8x1xi1> to vector<8x32xi1>
    %83 = arith.select %82, %75, %47 : vector<8x32xi1>, vector<8x32xf32>
    %84 = vector.shape_cast %80 : vector<8x1xi1> to vector<8x1xi1>
    %85 = vector.broadcast %84 : vector<8x1xi1> to vector<8x32xi1>
    %86 = arith.select %85, %73, %50 : vector<8x32xi1>, vector<8x32xf32>
    %c2_i32 = arith.constant 2 : i32
    %87 = arith.index_cast %c2_i32 : i32 to index
    %c0_20 = arith.constant 0 : index
    %c0_21 = arith.constant 0 : index
    %88 = vector.load %arg1[%87, %c0_20, %c0_21] : memref<8x8x128xf32, #tpu.memory_space<vmem>>, vector<1x8x128xf32>
    %89 = vector.shape_cast %88 : vector<1x8x128xf32> to vector<8x128xf32>
    %cst_22 = arith.constant dense<0.000000e+00> : vector<8x128xf32>
    %90 = tpu.matmul %83, %0, %cst_22 {dimension_numbers = #tpu.dot_dimension_numbers<[1], [0], [0], [1], [0, 0, 1, 1], [], []>} : vector<8x32xf32>, vector<32x128xf32>, vector<8x128xf32> -> vector<8x128xf32>
    %91 = arith.addf %89, %90 : vector<8x128xf32>
    %92 = vector.broadcast %9 : vector<1x128xf32> to vector<8x128xf32>
    %93 = arith.mulf %91, %92 : vector<8x128xf32>
    %94 = arith.negf %93 : vector<8x128xf32>
    %95 = math.exp %94 : vector<8x128xf32>
    %cst_23 = arith.constant 1.000000e+00 : f32
    %96 = vector.broadcast %cst_23 : f32 to vector<8x128xf32>
    %97 = arith.addf %96, %95 : vector<8x128xf32>
    %98 = arith.divf %96, %97 : vector<8x128xf32>
    %99 = vector.broadcast %9 : vector<1x128xf32> to vector<8x128xf32>
    %100 = arith.mulf %98, %99 : vector<8x128xf32>
    %101 = vector.broadcast %12 : vector<1x128xf32> to vector<8x128xf32>
    %102 = arith.addf %100, %101 : vector<8x128xf32>
    %103 = vector.extract_strided_slice %102 {offsets = [0, 0], sizes = [8, 32], strides = [1, 1]} : vector<8x128xf32> to vector<8x32xf32>
    %104 = vector.extract_strided_slice %102 {offsets = [0, 32], sizes = [8, 32], strides = [1, 1]} : vector<8x128xf32> to vector<8x32xf32>
    %105 = vector.extract_strided_slice %102 {offsets = [0, 64], sizes = [8, 32], strides = [1, 1]} : vector<8x128xf32> to vector<8x32xf32>
    %106 = vector.extract_strided_slice %102 {offsets = [0, 96], sizes = [8, 32], strides = [1, 1]} : vector<8x128xf32> to vector<8x32xf32>
    %107 = arith.mulf %104, %86 : vector<8x32xf32>
    %108 = arith.mulf %103, %105 : vector<8x32xf32>
    %109 = arith.addf %107, %108 : vector<8x32xf32>
    %110 = math.tanh %109 : vector<8x32xf32>
    %111 = arith.mulf %106, %110 : vector<8x32xf32>
    %112 = arith.index_cast %c2_i32 : i32 to index
    %c0_24 = arith.constant 0 : index
    %c0_25 = arith.constant 0 : index
    %113 = vector.load %arg2[%112, %c0_24, %c0_25] : memref<8x8x1xf32, #tpu.memory_space<vmem>>, vector<1x8x1xf32>
    %114 = vector.shape_cast %113 : vector<1x8x1xf32> to vector<8x1xf32>
    %cst_26 = arith.constant 0.000000e+00 : f32
    %115 = vector.broadcast %cst_26 : f32 to vector<8x1xf32>
    %116 = arith.cmpf ogt, %114, %115 : vector<8x1xf32>
    %117 = vector.shape_cast %116 : vector<8x1xi1> to vector<8x1xi1>
    %118 = vector.broadcast %117 : vector<8x1xi1> to vector<8x32xi1>
    %119 = arith.select %118, %111, %83 : vector<8x32xi1>, vector<8x32xf32>
    %120 = vector.shape_cast %116 : vector<8x1xi1> to vector<8x1xi1>
    %121 = vector.broadcast %120 : vector<8x1xi1> to vector<8x32xi1>
    %122 = arith.select %121, %109, %86 : vector<8x32xi1>, vector<8x32xf32>
    %c3_i32 = arith.constant 3 : i32
    %123 = arith.index_cast %c3_i32 : i32 to index
    %c0_27 = arith.constant 0 : index
    %c0_28 = arith.constant 0 : index
    %124 = vector.load %arg1[%123, %c0_27, %c0_28] : memref<8x8x128xf32, #tpu.memory_space<vmem>>, vector<1x8x128xf32>
    %125 = vector.shape_cast %124 : vector<1x8x128xf32> to vector<8x128xf32>
    %cst_29 = arith.constant dense<0.000000e+00> : vector<8x128xf32>
    %126 = tpu.matmul %119, %0, %cst_29 {dimension_numbers = #tpu.dot_dimension_numbers<[1], [0], [0], [1], [0, 0, 1, 1], [], []>} : vector<8x32xf32>, vector<32x128xf32>, vector<8x128xf32> -> vector<8x128xf32>
    %127 = arith.addf %125, %126 : vector<8x128xf32>
    %128 = vector.broadcast %9 : vector<1x128xf32> to vector<8x128xf32>
    %129 = arith.mulf %127, %128 : vector<8x128xf32>
    %130 = arith.negf %129 : vector<8x128xf32>
    %131 = math.exp %130 : vector<8x128xf32>
    %cst_30 = arith.constant 1.000000e+00 : f32
    %132 = vector.broadcast %cst_30 : f32 to vector<8x128xf32>
    %133 = arith.addf %132, %131 : vector<8x128xf32>
    %134 = arith.divf %132, %133 : vector<8x128xf32>
    %135 = vector.broadcast %9 : vector<1x128xf32> to vector<8x128xf32>
    %136 = arith.mulf %134, %135 : vector<8x128xf32>
    %137 = vector.broadcast %12 : vector<1x128xf32> to vector<8x128xf32>
    %138 = arith.addf %136, %137 : vector<8x128xf32>
    %139 = vector.extract_strided_slice %138 {offsets = [0, 0], sizes = [8, 32], strides = [1, 1]} : vector<8x128xf32> to vector<8x32xf32>
    %140 = vector.extract_strided_slice %138 {offsets = [0, 32], sizes = [8, 32], strides = [1, 1]} : vector<8x128xf32> to vector<8x32xf32>
    %141 = vector.extract_strided_slice %138 {offsets = [0, 64], sizes = [8, 32], strides = [1, 1]} : vector<8x128xf32> to vector<8x32xf32>
    %142 = vector.extract_strided_slice %138 {offsets = [0, 96], sizes = [8, 32], strides = [1, 1]} : vector<8x128xf32> to vector<8x32xf32>
    %143 = arith.mulf %140, %122 : vector<8x32xf32>
    %144 = arith.mulf %139, %141 : vector<8x32xf32>
    %145 = arith.addf %143, %144 : vector<8x32xf32>
    %146 = math.tanh %145 : vector<8x32xf32>
    %147 = arith.mulf %142, %146 : vector<8x32xf32>
    %148 = arith.index_cast %c3_i32 : i32 to index
    %c0_31 = arith.constant 0 : index
    %c0_32 = arith.constant 0 : index
    %149 = vector.load %arg2[%148, %c0_31, %c0_32] : memref<8x8x1xf32, #tpu.memory_space<vmem>>, vector<1x8x1xf32>
    %150 = vector.shape_cast %149 : vector<1x8x1xf32> to vector<8x1xf32>
    %cst_33 = arith.constant 0.000000e+00 : f32
    %151 = vector.broadcast %cst_33 : f32 to vector<8x1xf32>
    %152 = arith.cmpf ogt, %150, %151 : vector<8x1xf32>
    %153 = vector.shape_cast %152 : vector<8x1xi1> to vector<8x1xi1>
    %154 = vector.broadcast %153 : vector<8x1xi1> to vector<8x32xi1>
    %155 = arith.select %154, %147, %119 : vector<8x32xi1>, vector<8x32xf32>
    %156 = vector.shape_cast %152 : vector<8x1xi1> to vector<8x1xi1>
    %157 = vector.broadcast %156 : vector<8x1xi1> to vector<8x32xi1>
    %158 = arith.select %157, %145, %122 : vector<8x32xi1>, vector<8x32xf32>
    %c4_i32 = arith.constant 4 : i32
    %159 = arith.index_cast %c4_i32 : i32 to index
    %c0_34 = arith.constant 0 : index
    %c0_35 = arith.constant 0 : index
    %160 = vector.load %arg1[%159, %c0_34, %c0_35] : memref<8x8x128xf32, #tpu.memory_space<vmem>>, vector<1x8x128xf32>
    %161 = vector.shape_cast %160 : vector<1x8x128xf32> to vector<8x128xf32>
    %cst_36 = arith.constant dense<0.000000e+00> : vector<8x128xf32>
    %162 = tpu.matmul %155, %0, %cst_36 {dimension_numbers = #tpu.dot_dimension_numbers<[1], [0], [0], [1], [0, 0, 1, 1], [], []>} : vector<8x32xf32>, vector<32x128xf32>, vector<8x128xf32> -> vector<8x128xf32>
    %163 = arith.addf %161, %162 : vector<8x128xf32>
    %164 = vector.broadcast %9 : vector<1x128xf32> to vector<8x128xf32>
    %165 = arith.mulf %163, %164 : vector<8x128xf32>
    %166 = arith.negf %165 : vector<8x128xf32>
    %167 = math.exp %166 : vector<8x128xf32>
    %cst_37 = arith.constant 1.000000e+00 : f32
    %168 = vector.broadcast %cst_37 : f32 to vector<8x128xf32>
    %169 = arith.addf %168, %167 : vector<8x128xf32>
    %170 = arith.divf %168, %169 : vector<8x128xf32>
    %171 = vector.broadcast %9 : vector<1x128xf32> to vector<8x128xf32>
    %172 = arith.mulf %170, %171 : vector<8x128xf32>
    %173 = vector.broadcast %12 : vector<1x128xf32> to vector<8x128xf32>
    %174 = arith.addf %172, %173 : vector<8x128xf32>
    %175 = vector.extract_strided_slice %174 {offsets = [0, 0], sizes = [8, 32], strides = [1, 1]} : vector<8x128xf32> to vector<8x32xf32>
    %176 = vector.extract_strided_slice %174 {offsets = [0, 32], sizes = [8, 32], strides = [1, 1]} : vector<8x128xf32> to vector<8x32xf32>
    %177 = vector.extract_strided_slice %174 {offsets = [0, 64], sizes = [8, 32], strides = [1, 1]} : vector<8x128xf32> to vector<8x32xf32>
    %178 = vector.extract_strided_slice %174 {offsets = [0, 96], sizes = [8, 32], strides = [1, 1]} : vector<8x128xf32> to vector<8x32xf32>
    %179 = arith.mulf %176, %158 : vector<8x32xf32>
    %180 = arith.mulf %175, %177 : vector<8x32xf32>
    %181 = arith.addf %179, %180 : vector<8x32xf32>
    %182 = math.tanh %181 : vector<8x32xf32>
    %183 = arith.mulf %178, %182 : vector<8x32xf32>
    %184 = arith.index_cast %c4_i32 : i32 to index
    %c0_38 = arith.constant 0 : index
    %c0_39 = arith.constant 0 : index
    %185 = vector.load %arg2[%184, %c0_38, %c0_39] : memref<8x8x1xf32, #tpu.memory_space<vmem>>, vector<1x8x1xf32>
    %186 = vector.shape_cast %185 : vector<1x8x1xf32> to vector<8x1xf32>
    %cst_40 = arith.constant 0.000000e+00 : f32
    %187 = vector.broadcast %cst_40 : f32 to vector<8x1xf32>
    %188 = arith.cmpf ogt, %186, %187 : vector<8x1xf32>
    %189 = vector.shape_cast %188 : vector<8x1xi1> to vector<8x1xi1>
    %190 = vector.broadcast %189 : vector<8x1xi1> to vector<8x32xi1>
    %191 = arith.select %190, %183, %155 : vector<8x32xi1>, vector<8x32xf32>
    %192 = vector.shape_cast %188 : vector<8x1xi1> to vector<8x1xi1>
    %193 = vector.broadcast %192 : vector<8x1xi1> to vector<8x32xi1>
    %194 = arith.select %193, %181, %158 : vector<8x32xi1>, vector<8x32xf32>
    %c5_i32 = arith.constant 5 : i32
    %195 = arith.index_cast %c5_i32 : i32 to index
    %c0_41 = arith.constant 0 : index
    %c0_42 = arith.constant 0 : index
    %196 = vector.load %arg1[%195, %c0_41, %c0_42] : memref<8x8x128xf32, #tpu.memory_space<vmem>>, vector<1x8x128xf32>
    %197 = vector.shape_cast %196 : vector<1x8x128xf32> to vector<8x128xf32>
    %cst_43 = arith.constant dense<0.000000e+00> : vector<8x128xf32>
    %198 = tpu.matmul %191, %0, %cst_43 {dimension_numbers = #tpu.dot_dimension_numbers<[1], [0], [0], [1], [0, 0, 1, 1], [], []>} : vector<8x32xf32>, vector<32x128xf32>, vector<8x128xf32> -> vector<8x128xf32>
    %199 = arith.addf %197, %198 : vector<8x128xf32>
    %200 = vector.broadcast %9 : vector<1x128xf32> to vector<8x128xf32>
    %201 = arith.mulf %199, %200 : vector<8x128xf32>
    %202 = arith.negf %201 : vector<8x128xf32>
    %203 = math.exp %202 : vector<8x128xf32>
    %cst_44 = arith.constant 1.000000e+00 : f32
    %204 = vector.broadcast %cst_44 : f32 to vector<8x128xf32>
    %205 = arith.addf %204, %203 : vector<8x128xf32>
    %206 = arith.divf %204, %205 : vector<8x128xf32>
    %207 = vector.broadcast %9 : vector<1x128xf32> to vector<8x128xf32>
    %208 = arith.mulf %206, %207 : vector<8x128xf32>
    %209 = vector.broadcast %12 : vector<1x128xf32> to vector<8x128xf32>
    %210 = arith.addf %208, %209 : vector<8x128xf32>
    %211 = vector.extract_strided_slice %210 {offsets = [0, 0], sizes = [8, 32], strides = [1, 1]} : vector<8x128xf32> to vector<8x32xf32>
    %212 = vector.extract_strided_slice %210 {offsets = [0, 32], sizes = [8, 32], strides = [1, 1]} : vector<8x128xf32> to vector<8x32xf32>
    %213 = vector.extract_strided_slice %210 {offsets = [0, 64], sizes = [8, 32], strides = [1, 1]} : vector<8x128xf32> to vector<8x32xf32>
    %214 = vector.extract_strided_slice %210 {offsets = [0, 96], sizes = [8, 32], strides = [1, 1]} : vector<8x128xf32> to vector<8x32xf32>
    %215 = arith.mulf %212, %194 : vector<8x32xf32>
    %216 = arith.mulf %211, %213 : vector<8x32xf32>
    %217 = arith.addf %215, %216 : vector<8x32xf32>
    %218 = math.tanh %217 : vector<8x32xf32>
    %219 = arith.mulf %214, %218 : vector<8x32xf32>
    %220 = arith.index_cast %c5_i32 : i32 to index
    %c0_45 = arith.constant 0 : index
    %c0_46 = arith.constant 0 : index
    %221 = vector.load %arg2[%220, %c0_45, %c0_46] : memref<8x8x1xf32, #tpu.memory_space<vmem>>, vector<1x8x1xf32>
    %222 = vector.shape_cast %221 : vector<1x8x1xf32> to vector<8x1xf32>
    %cst_47 = arith.constant 0.000000e+00 : f32
    %223 = vector.broadcast %cst_47 : f32 to vector<8x1xf32>
    %224 = arith.cmpf ogt, %222, %223 : vector<8x1xf32>
    %225 = vector.shape_cast %224 : vector<8x1xi1> to vector<8x1xi1>
    %226 = vector.broadcast %225 : vector<8x1xi1> to vector<8x32xi1>
    %227 = arith.select %226, %219, %191 : vector<8x32xi1>, vector<8x32xf32>
    %228 = vector.shape_cast %224 : vector<8x1xi1> to vector<8x1xi1>
    %229 = vector.broadcast %228 : vector<8x1xi1> to vector<8x32xi1>
    %230 = arith.select %229, %217, %194 : vector<8x32xi1>, vector<8x32xf32>
    %c6_i32 = arith.constant 6 : i32
    %231 = arith.index_cast %c6_i32 : i32 to index
    %c0_48 = arith.constant 0 : index
    %c0_49 = arith.constant 0 : index
    %232 = vector.load %arg1[%231, %c0_48, %c0_49] : memref<8x8x128xf32, #tpu.memory_space<vmem>>, vector<1x8x128xf32>
    %233 = vector.shape_cast %232 : vector<1x8x128xf32> to vector<8x128xf32>
    %cst_50 = arith.constant dense<0.000000e+00> : vector<8x128xf32>
    %234 = tpu.matmul %227, %0, %cst_50 {dimension_numbers = #tpu.dot_dimension_numbers<[1], [0], [0], [1], [0, 0, 1, 1], [], []>} : vector<8x32xf32>, vector<32x128xf32>, vector<8x128xf32> -> vector<8x128xf32>
    %235 = arith.addf %233, %234 : vector<8x128xf32>
    %236 = vector.broadcast %9 : vector<1x128xf32> to vector<8x128xf32>
    %237 = arith.mulf %235, %236 : vector<8x128xf32>
    %238 = arith.negf %237 : vector<8x128xf32>
    %239 = math.exp %238 : vector<8x128xf32>
    %cst_51 = arith.constant 1.000000e+00 : f32
    %240 = vector.broadcast %cst_51 : f32 to vector<8x128xf32>
    %241 = arith.addf %240, %239 : vector<8x128xf32>
    %242 = arith.divf %240, %241 : vector<8x128xf32>
    %243 = vector.broadcast %9 : vector<1x128xf32> to vector<8x128xf32>
    %244 = arith.mulf %242, %243 : vector<8x128xf32>
    %245 = vector.broadcast %12 : vector<1x128xf32> to vector<8x128xf32>
    %246 = arith.addf %244, %245 : vector<8x128xf32>
    %247 = vector.extract_strided_slice %246 {offsets = [0, 0], sizes = [8, 32], strides = [1, 1]} : vector<8x128xf32> to vector<8x32xf32>
    %248 = vector.extract_strided_slice %246 {offsets = [0, 32], sizes = [8, 32], strides = [1, 1]} : vector<8x128xf32> to vector<8x32xf32>
    %249 = vector.extract_strided_slice %246 {offsets = [0, 64], sizes = [8, 32], strides = [1, 1]} : vector<8x128xf32> to vector<8x32xf32>
    %250 = vector.extract_strided_slice %246 {offsets = [0, 96], sizes = [8, 32], strides = [1, 1]} : vector<8x128xf32> to vector<8x32xf32>
    %251 = arith.mulf %248, %230 : vector<8x32xf32>
    %252 = arith.mulf %247, %249 : vector<8x32xf32>
    %253 = arith.addf %251, %252 : vector<8x32xf32>
    %254 = math.tanh %253 : vector<8x32xf32>
    %255 = arith.mulf %250, %254 : vector<8x32xf32>
    %256 = arith.index_cast %c6_i32 : i32 to index
    %c0_52 = arith.constant 0 : index
    %c0_53 = arith.constant 0 : index
    %257 = vector.load %arg2[%256, %c0_52, %c0_53] : memref<8x8x1xf32, #tpu.memory_space<vmem>>, vector<1x8x1xf32>
    %258 = vector.shape_cast %257 : vector<1x8x1xf32> to vector<8x1xf32>
    %cst_54 = arith.constant 0.000000e+00 : f32
    %259 = vector.broadcast %cst_54 : f32 to vector<8x1xf32>
    %260 = arith.cmpf ogt, %258, %259 : vector<8x1xf32>
    %261 = vector.shape_cast %260 : vector<8x1xi1> to vector<8x1xi1>
    %262 = vector.broadcast %261 : vector<8x1xi1> to vector<8x32xi1>
    %263 = arith.select %262, %255, %227 : vector<8x32xi1>, vector<8x32xf32>
    %264 = vector.shape_cast %260 : vector<8x1xi1> to vector<8x1xi1>
    %265 = vector.broadcast %264 : vector<8x1xi1> to vector<8x32xi1>
    %266 = arith.select %265, %253, %230 : vector<8x32xi1>, vector<8x32xf32>
    %c7_i32 = arith.constant 7 : i32
    %267 = arith.index_cast %c7_i32 : i32 to index
    %c0_55 = arith.constant 0 : index
    %c0_56 = arith.constant 0 : index
    %268 = vector.load %arg1[%267, %c0_55, %c0_56] : memref<8x8x128xf32, #tpu.memory_space<vmem>>, vector<1x8x128xf32>
    %269 = vector.shape_cast %268 : vector<1x8x128xf32> to vector<8x128xf32>
    %cst_57 = arith.constant dense<0.000000e+00> : vector<8x128xf32>
    %270 = tpu.matmul %263, %0, %cst_57 {dimension_numbers = #tpu.dot_dimension_numbers<[1], [0], [0], [1], [0, 0, 1, 1], [], []>} : vector<8x32xf32>, vector<32x128xf32>, vector<8x128xf32> -> vector<8x128xf32>
    %271 = arith.addf %269, %270 : vector<8x128xf32>
    %272 = vector.broadcast %9 : vector<1x128xf32> to vector<8x128xf32>
    %273 = arith.mulf %271, %272 : vector<8x128xf32>
    %274 = arith.negf %273 : vector<8x128xf32>
    %275 = math.exp %274 : vector<8x128xf32>
    %cst_58 = arith.constant 1.000000e+00 : f32
    %276 = vector.broadcast %cst_58 : f32 to vector<8x128xf32>
    %277 = arith.addf %276, %275 : vector<8x128xf32>
    %278 = arith.divf %276, %277 : vector<8x128xf32>
    %279 = vector.broadcast %9 : vector<1x128xf32> to vector<8x128xf32>
    %280 = arith.mulf %278, %279 : vector<8x128xf32>
    %281 = vector.broadcast %12 : vector<1x128xf32> to vector<8x128xf32>
    %282 = arith.addf %280, %281 : vector<8x128xf32>
    %283 = vector.extract_strided_slice %282 {offsets = [0, 0], sizes = [8, 32], strides = [1, 1]} : vector<8x128xf32> to vector<8x32xf32>
    %284 = vector.extract_strided_slice %282 {offsets = [0, 32], sizes = [8, 32], strides = [1, 1]} : vector<8x128xf32> to vector<8x32xf32>
    %285 = vector.extract_strided_slice %282 {offsets = [0, 64], sizes = [8, 32], strides = [1, 1]} : vector<8x128xf32> to vector<8x32xf32>
    %286 = vector.extract_strided_slice %282 {offsets = [0, 96], sizes = [8, 32], strides = [1, 1]} : vector<8x128xf32> to vector<8x32xf32>
    %287 = arith.mulf %284, %266 : vector<8x32xf32>
    %288 = arith.mulf %283, %285 : vector<8x32xf32>
    %289 = arith.addf %287, %288 : vector<8x32xf32>
    %290 = math.tanh %289 : vector<8x32xf32>
    %291 = arith.mulf %286, %290 : vector<8x32xf32>
    %292 = arith.index_cast %c7_i32 : i32 to index
    %c0_59 = arith.constant 0 : index
    %c0_60 = arith.constant 0 : index
    %293 = vector.load %arg2[%292, %c0_59, %c0_60] : memref<8x8x1xf32, #tpu.memory_space<vmem>>, vector<1x8x1xf32>
    %294 = vector.shape_cast %293 : vector<1x8x1xf32> to vector<8x1xf32>
    %cst_61 = arith.constant 0.000000e+00 : f32
    %295 = vector.broadcast %cst_61 : f32 to vector<8x1xf32>
    %296 = arith.cmpf ogt, %294, %295 : vector<8x1xf32>
    %297 = vector.shape_cast %296 : vector<8x1xi1> to vector<8x1xi1>
    %298 = vector.broadcast %297 : vector<8x1xi1> to vector<8x32xi1>
    %299 = arith.select %298, %291, %263 : vector<8x32xi1>, vector<8x32xf32>
    %300 = vector.shape_cast %296 : vector<8x1xi1> to vector<8x1xi1>
    %301 = vector.broadcast %300 : vector<8x1xi1> to vector<8x32xi1>
    %302 = arith.select %301, %289, %266 : vector<8x32xi1>, vector<8x32xf32>
    %c8_i32 = arith.constant 8 : i32
    %c0_62 = arith.constant 0 : index
    %c0_63 = arith.constant 0 : index
    %303 = vector.load %arg4[%c0_62, %c0_63] : memref<8x32xf32, #tpu.memory_space<vmem>>, vector<8x32xf32>
    tpu.vector_store %arg4[%c0_62, %c0_63], %302 {strides = array<i32>} : memref<8x32xf32, #tpu.memory_space<vmem>>, vector<8x32xf32>,
    return
  }
  func.func @transform_0(%arg0: i32) -> (i32, i32, i32) {
    %c0_i32 = arith.constant 0 : i32
    %c0_i32_0 = arith.constant 0 : i32
    %c0_i32_1 = arith.constant 0 : i32
    return %c0_i32, %arg0, %c0_i32_0 : i32, i32, i32
  }
  func.func @transform_1(%arg0: i32) -> (i32, i32, i32) {
    %c0_i32 = arith.constant 0 : i32
    %c0_i32_0 = arith.constant 0 : i32
    %c0_i32_1 = arith.constant 0 : i32
    return %c0_i32, %arg0, %c0_i32_0 : i32, i32, i32
  }
  func.func @transform_2(%arg0: i32) -> (i32, i32) {
    %c0_i32 = arith.constant 0 : i32
    %c0_i32_0 = arith.constant 0 : i32
    %c0_i32_1 = arith.constant 0 : i32
    return %c0_i32, %c0_i32_0 : i32, i32
  }
  func.func @transform_3(%arg0: i32) -> (i32, i32) {
    %c0_i32 = arith.constant 0 : i32
    %c0_i32_0 = arith.constant 0 : i32
    return %arg0, %c0_i32 : i32, i32
  }
}

</mosaic_0001>

<llo_original>
// kernel: tpu_custom_call.1
$region0: #{tpu_custom_call.1}
  #allocation0 [shape = 'u32[]', space=smem, size = 0x4, offset = 0x4, fixed_abs, tag = 'smem constant byte address 0x4 - core index']
  #allocation1 [shape = 'u32[144,128]{1,0:T(1,128)}', space=vmem, size = 0x12000, scoped, tag = 'internal scratch']
  %s0 = inlined_call_operand.vmem [shape: f32[8,8,128], index: 0, kind: input, shape index: {}]
  %s1 = inlined_call_operand.vmem [shape: f32[8,8,1], index: 1, kind: input, shape index: {}]
  %s2 = inlined_call_operand.hbm [shape: f32[32,128], index: 2, kind: input, shape index: {}]
  %s3 = inlined_call_operand.hbm [shape: f32[8,32], index: 3, kind: output, shape index: {}]
  %s4 = sld [smem:[#allocation0]]
  $region26: #{tpu_custom_call.1} parent=0
    _
  %s6 = ssub.s32 1, %s4
  %s7 = scalar_select 0, %s6, %s4
  $region1: #{tpu_custom_call.1} parent=0
    #allocation2 [shape = 'u8[16384]{0}', space=vmem, size = 0x4000, scoped, tag = 'input window, operand 2, single buffered']
    #allocation3 [shape = 's32[1]{0}', space=sflag, size = 0x4, scoped, tag = 'scoped memory for tpu_custom_call.1']
    #allocation4 [shape = 's32[1]{0}', space=sflag, size = 0x4, scoped, tag = 'scoped memory for tpu_custom_call.1']
    #allocation5 [shape = 'u8[4096]{0}', space=vmem, size = 0x1000, scoped, tag = 'output window, operand 0, single buffered']
    %8 = vsyncpa [#allocation3], 0
    %9 = vsyncpa [#allocation4], 0
    // Predicated region
    $region2: #{tpu_custom_call.1} parent=1 // pred_check
      _
    $region3: #{tpu_custom_call.1} parent=1 // pred_check_branch
      %11 = sbr.rel (0) target = $region5
    $region4: #{tpu_custom_call.1} parent=1 // pred_region
      _
    $region5: #{tpu_custom_call.1} parent=1 // pred_fallthru
      _
    // Predicated region
    $region6: #{tpu_custom_call.1} parent=1 // pred_check
      _
    $region7: #{tpu_custom_call.1} parent=1 // pred_check_branch
      %13 = sbr.rel (0) target = $region9
    $region8: #{tpu_custom_call.1} parent=1 // pred_region
      _
    $region9: #{tpu_custom_call.1} parent=1 // pred_fallthru
      _
    // Predicated region
    $region10: #{tpu_custom_call.1} parent=1 // pred_check
      _
    $region11: #{tpu_custom_call.1} parent=1 // pred_check_branch
      %15 = sbr.rel (0) target = $region13
    $region12: #{tpu_custom_call.1} parent=1 // pred_region
      %s17 = ssub.s32 512, 512
      %18 = vsyncadd [#allocation3], %s17
      %s19 = sshll.u32 [#allocation2], 4
      %s20 = int_to_ptr.vmem [resolvable:$true] %s19
      %25 = dma.hbm_to_vmem [thread:$0]  %s2, 512, %s20, [#allocation3], 128, 128, 8
    $region13: #{tpu_custom_call.1} parent=1 // pred_fallthru
      _
    // Predicated region
    $region14: #{tpu_custom_call.1} parent=1 // pred_check
      _
    $region15: #{tpu_custom_call.1} parent=1 // pred_check_branch
      %27 = sbr.rel (0) target = $region17
    $region16: #{tpu_custom_call.1} parent=1 // pred_region
      %28 = dma.done [#allocation3], 512
    $region17: #{tpu_custom_call.1} parent=1 // pred_fallthru
      _
    %v29 = vld [vmem:[#allocation2] sm:$0xff]
    %v30 = vld [vmem:[#allocation2 + $0x8] sm:$0xff]
    %v31 = vld [vmem:[#allocation2 + $0x10] sm:$0xff]
    %v32 = vld [vmem:[#allocation2 + $0x18] sm:$0xff]
    %v33 = vlaneseq
    %v34 = vand.u32 %v33, 127
    %vm35 = vcmp.ge.s32.totalorder %v34, 64
    %vm36 = vcmp.lt.s32.totalorder %v34, 96
    %vm37 = vmand %vm35, %vm36
    %v38 = vsel %vm37, 2.0, 1.0
    %v39 = vsel %vm37, -1.0, 0.0
    %v40 = vld [vmem:[%s0] sm:$0xff]
    %vm41 = vcmask 261120
    %v43 = vsel %vm41, 0.0, 0
    %45 = vmatprep.subr.mxu0 0.0
    %46 = vmatpush1.msra.mxu0 0.0
    %47 = vmatprep.subr.mxu0 0.0
    %48 = vmatpush1.msra.mxu0 0.0
    %49 = vmatprep.subr.mxu0 0.0
    %50 = vmatpush1.msra.mxu0 0.0
    %51 = vmatprep.subr.mxu0 0.0
    %52 = vmatpush1.msra.mxu0 0.0
    %53 = vmatprep.subr.mxu0 0.0
    %54 = vmatpush1.msra.mxu0 0.0
    %55 = vmatprep.subr.mxu0 0.0
    %56 = vmatpush1.msra.mxu0 0.0
    %57 = vmatprep.subr.mxu0 0.0
    %58 = vmatpush1.msra.mxu0 0.0
    %59 = vmatprep.subr.mxu0 0.0
    %60 = vmatpush1.msra.mxu0 0.0
    %61 = vmatprep.subr.mxu0 0.0
    %62 = vmatpush1.msra.mxu0 0.0
    %63 = vmatprep.subr.mxu0 0.0
    %64 = vmatpush1.msra.mxu0 0.0
    %65 = vmatprep.subr.mxu0 0.0
    %66 = vmatpush1.msra.mxu0 0.0
    %67 = vmatprep.subr.mxu0 0.0
    %68 = vmatpush1.msra.mxu0 0.0
    %69 = vmatprep.subr.mxu0 0.0
    %70 = vmatpush1.msra.mxu0 %v32
    %71 = vmatprep.subr.mxu0 0.0
    %72 = vmatpush1.msra.mxu0 %v31
    %73 = vmatprep.subr.mxu0 0.0
    %74 = vmatpush1.msra.mxu0 %v30
    %75 = vmatprep.subr.mxu0 0.0
    %76 = vmatpush1.msra.mxu0 %v29
    %77 = vmatprep.subr.mxu0 0.0
    %78 = vmatpush2.msra.mxu0 0.0
    %79 = vmatprep.subr.mxu0 0.0
    %80 = vmatpush2.msra.mxu0 0.0
    %81 = vmatprep.subr.mxu0 0.0
    %82 = vmatpush2.msra.mxu0 0.0
    %83 = vmatprep.subr.mxu0 0.0
    %84 = vmatpush2.msra.mxu0 0.0
    %85 = vmatprep.subr.mxu0 0.0
    %86 = vmatpush2.msra.mxu0 0.0
    %87 = vmatprep.subr.mxu0 0.0
    %88 = vmatpush2.msra.mxu0 0.0
    %89 = vmatprep.subr.mxu0 0.0
    %90 = vmatpush2.msra.mxu0 0.0
    %91 = vmatprep.subr.mxu0 0.0
    %92 = vmatpush2.msra.mxu0 0.0
    %93 = vmatprep.subr.mxu0 0.0
    %94 = vmatpush2.msra.mxu0 0.0
    %95 = vmatprep.subr.mxu0 0.0
    %96 = vmatpush2.msra.mxu0 0.0
    %97 = vmatprep.subr.mxu0 0.0
    %98 = vmatpush2.msra.mxu0 0.0
    %99 = vmatprep.subr.mxu0 0.0
    %100 = vmatpush2.msra.mxu0 0.0
    %101 = vmatprep.subr.mxu0 0.0
    %102 = vmatpush2.msra.mxu0 0.0
    %103 = vmatprep.subr.mxu0 0.0
    %104 = vmatpush2.msra.mxu0 0.0
    %105 = vmatprep.subr.mxu0 0.0
    %106 = vmatpush2.msra.mxu0 0.0
    %107 = vmatprep.subr.mxu0 0.0
    %108 = vmatpush2.msra.mxu0 0.0
    %109 = vmatprep.mubr.f32.mxu0 0.0
    %110 = vmatmul.mubr.f32.gmra.mxu0 %v43
    %v111 = vpop.f32.mrf.mxu0
    %v112 = vadd.f32 0.0, %v111
    %v113 = vpop.f32.mrf.mxu0
    %114 = vdwg.mxu0
    %v115 = vadd.f32 %v40, %v112
    %v116 = vmul.f32 %v115, %v38
    %v117 = vxor.u32 %v116, 2147483648
    %v118 = vmul.f32 %v117, 1.442695
    %v119 = vpow.pop %v118
    %v120 = vadd.f32 %v119, 1.0
    %v121 = vrcp.pop %v120
    %v122 = vmul.f32 1.0, %v121
    %v123 = vmul.f32 %v122, %v38
    %v124 = vadd.f32 %v123, %v39
    %v125 = vmul.f32 %v124, 0.0
    %127 = vrot.lane.b32.xlu0 %v124, 64
    %v128 = vpop.permute.xlu0 %127
    %v130 = vmul.f32 %v124, %v128
    %132 = vrot.lane.b32.xlu0 %v130, 32
    %v133 = vpop.permute.xlu0 %132
    %v135 = vadd.f32 %v125, %v133
    %v136 = vtanh.pop %v135
    %138 = vrot.lane.b32.xlu0 %v136, 64
    %v139 = vpop.permute.xlu0 %138
    %v141 = vmul.f32 %v124, %v139
    %v142 = vld [vmem:[%s1] sm:$0xff]
    %vm143 = vcmp.gt.f32.partialorder %v142, 0.0
    %v144 = vsel %vm143, 1, 0
    %145 = vset.pattern.permute.xlu0 0
    %146 = vperm.xlu0 %145, %v144
    %v147 = vpop.permute.xlu0 %146
    %vm148 = vcmp.eq.s32.totalorder %v147, 1
    %v149 = vsel %vm148, %v141, 0.0
    %v150 = vsel %vm148, %v135, 0.0
    %s151 = scalar_lea.vmem %s0, 8
    %v152 = vld [vmem:[%s151] sm:$0xff]
    %154 = vrot.lane.b32.xlu0 %v149, 32
    %v155 = vpop.permute.xlu0 %154
    %v156 = vsel %vm41, %v155, 0
    %158 = vmatprep.subr.mxu0 0.0
    %159 = vmatpush1.msra.mxu0 0.0
    %160 = vmatprep.subr.mxu0 0.0
    %161 = vmatpush1.msra.mxu0 0.0
    %162 = vmatprep.subr.mxu0 0.0
    %163 = vmatpush1.msra.mxu0 0.0
    %164 = vmatprep.subr.mxu0 0.0
    %165 = vmatpush1.msra.mxu0 0.0
    %166 = vmatprep.subr.mxu0 0.0
    %167 = vmatpush1.msra.mxu0 0.0
    %168 = vmatprep.subr.mxu0 0.0
    %169 = vmatpush1.msra.mxu0 0.0
    %170 = vmatprep.subr.mxu0 0.0
    %171 = vmatpush1.msra.mxu0 0.0
    %172 = vmatprep.subr.mxu0 0.0
    %173 = vmatpush1.msra.mxu0 0.0
    %174 = vmatprep.subr.mxu0 0.0
    %175 = vmatpush1.msra.mxu0 0.0
    %176 = vmatprep.subr.mxu0 0.0
    %177 = vmatpush1.msra.mxu0 0.0
    %178 = vmatprep.subr.mxu0 0.0
    %179 = vmatpush1.msra.mxu0 0.0
    %180 = vmatprep.subr.mxu0 0.0
    %181 = vmatpush1.msra.mxu0 0.0
    %182 = vmatprep.subr.mxu0 0.0
    %183 = vmatpush1.msra.mxu0 %v32
    %184 = vmatprep.subr.mxu0 0.0
    %185 = vmatpush1.msra.mxu0 %v31
    %186 = vmatprep.subr.mxu0 0.0
    %187 = vmatpush1.msra.mxu0 %v30
    %188 = vmatprep.subr.mxu0 0.0
    %189 = vmatpush1.msra.mxu0 %v29
    %190 = vmatprep.subr.mxu0 0.0
    %191 = vmatpush2.msra.mxu0 0.0
    %192 = vmatprep.subr.mxu0 0.0
    %193 = vmatpush2.msra.mxu0 0.0
    %194 = vmatprep.subr.mxu0 0.0
    %195 = vmatpush2.msra.mxu0 0.0
    %196 = vmatprep.subr.mxu0 0.0
    %197 = vmatpush2.msra.mxu0 0.0
    %198 = vmatprep.subr.mxu0 0.0
    %199 = vmatpush2.msra.mxu0 0.0
    %200 = vmatprep.subr.mxu0 0.0
    %201 = vmatpush2.msra.mxu0 0.0
    %202 = vmatprep.subr.mxu0 0.0
    %203 = vmatpush2.msra.mxu0 0.0
    %204 = vmatprep.subr.mxu0 0.0
    %205 = vmatpush2.msra.mxu0 0.0
    %206 = vmatprep.subr.mxu0 0.0
    %207 = vmatpush2.msra.mxu0 0.0
    %208 = vmatprep.subr.mxu0 0.0
    %209 = vmatpush2.msra.mxu0 0.0
    %210 = vmatprep.subr.mxu0 0.0
    %211 = vmatpush2.msra.mxu0 0.0
    %212 = vmatprep.subr.mxu0 0.0
    %213 = vmatpush2.msra.mxu0 0.0
    %214 = vmatprep.subr.mxu0 0.0
    %215 = vmatpush2.msra.mxu0 0.0
    %216 = vmatprep.subr.mxu0 0.0
    %217 = vmatpush2.msra.mxu0 0.0
    %218 = vmatprep.subr.mxu0 0.0
    %219 = vmatpush2.msra.mxu0 0.0
    %220 = vmatprep.subr.mxu0 0.0
    %221 = vmatpush2.msra.mxu0 0.0
    %222 = vmatprep.mubr.f32.mxu0 0.0
    %223 = vmatmul.mubr.f32.gmra.mxu0 %v156
    %v224 = vpop.f32.mrf.mxu0
    %v225 = vadd.f32 0.0, %v224
    %v226 = vpop.f32.mrf.mxu0
    %227 = vdwg.mxu0
    %v228 = vadd.f32 %v152, %v225
    %v229 = vmul.f32 %v228, %v38
    %v230 = vxor.u32 %v229, 2147483648
    %v231 = vmul.f32 %v230, 1.442695
    %v232 = vpow.pop %v231
    %v233 = vadd.f32 %v232, 1.0
    %v234 = vrcp.pop %v233
    %v235 = vmul.f32 1.0, %v234
    %v236 = vmul.f32 %v235, %v38
    %v237 = vadd.f32 %v236, %v39
    %v238 = vmul.f32 %v237, %v150
    %240 = vrot.lane.b32.xlu0 %v237, 64
    %v241 = vpop.permute.xlu0 %240
    %v243 = vmul.f32 %v237, %v241
    %245 = vrot.lane.b32.xlu0 %v243, 32
    %v246 = vpop.permute.xlu0 %245
    %v248 = vadd.f32 %v238, %v246
    %v249 = vtanh.pop %v248
    %251 = vrot.lane.b32.xlu0 %v249, 64
    %v252 = vpop.permute.xlu0 %251
    %v254 = vmul.f32 %v237, %v252
    %s255 = scalar_lea.vmem %s1, 8
    %v256 = vld [vmem:[%s255] sm:$0xff]
    %vm257 = vcmp.gt.f32.partialorder %v256, 0.0
    %v258 = vsel %vm257, 1, 0
    %259 = vset.pattern.permute.xlu0 0
    %260 = vperm.xlu0 %259, %v258
    %v261 = vpop.permute.xlu0 %260
    %vm262 = vcmp.eq.s32.totalorder %v261, 1
    %v263 = vsel %vm262, %v254, %v149
    %v264 = vsel %vm262, %v248, %v150
    %s265 = scalar_lea.vmem %s0, 16
    %v266 = vld [vmem:[%s265] sm:$0xff]
    %268 = vrot.lane.b32.xlu0 %v263, 32
    %v269 = vpop.permute.xlu0 %268
    %v270 = vsel %vm41, %v269, 0
    %272 = vmatprep.subr.mxu0 0.0
    %273 = vmatpush1.msra.mxu0 0.0
    %274 = vmatprep.subr.mxu0 0.0
    %275 = vmatpush1.msra.mxu0 0.0
    %276 = vmatprep.subr.mxu0 0.0
    %277 = vmatpush1.msra.mxu0 0.0
    %278 = vmatprep.subr.mxu0 0.0
    %279 = vmatpush1.msra.mxu0 0.0
    %280 = vmatprep.subr.mxu0 0.0
    %281 = vmatpush1.msra.mxu0 0.0
    %282 = vmatprep.subr.mxu0 0.0
    %283 = vmatpush1.msra.mxu0 0.0
    %284 = vmatprep.subr.mxu0 0.0
    %285 = vmatpush1.msra.mxu0 0.0
    %286 = vmatprep.subr.mxu0 0.0
    %287 = vmatpush1.msra.mxu0 0.0
    %288 = vmatprep.subr.mxu0 0.0
    %289 = vmatpush1.msra.mxu0 0.0
    %290 = vmatprep.subr.mxu0 0.0
    %291 = vmatpush1.msra.mxu0 0.0
    %292 = vmatprep.subr.mxu0 0.0
    %293 = vmatpush1.msra.mxu0 0.0
    %294 = vmatprep.subr.mxu0 0.0
    %295 = vmatpush1.msra.mxu0 0.0
    %296 = vmatprep.subr.mxu0 0.0
    %297 = vmatpush1.msra.mxu0 %v32
    %298 = vmatprep.subr.mxu0 0.0
    %299 = vmatpush1.msra.mxu0 %v31
    %300 = vmatprep.subr.mxu0 0.0
    %301 = vmatpush1.msra.mxu0 %v30
    %302 = vmatprep.subr.mxu0 0.0
    %303 = vmatpush1.msra.mxu0 %v29
    %304 = vmatprep.subr.mxu0 0.0
    %305 = vmatpush2.msra.mxu0 0.0
    %306 = vmatprep.subr.mxu0 0.0
    %307 = vmatpush2.msra.mxu0 0.0
    %308 = vmatprep.subr.mxu0 0.0
    %309 = vmatpush2.msra.mxu0 0.0
    %310 = vmatprep.subr.mxu0 0.0
    %311 = vmatpush2.msra.mxu0 0.0
    %312 = vmatprep.subr.mxu0 0.0
    %313 = vmatpush2.msra.mxu0 0.0
    %314 = vmatprep.subr.mxu0 0.0
    %315 = vmatpush2.msra.mxu0 0.0
    %316 = vmatprep.subr.mxu0 0.0
    %317 = vmatpush2.msra.mxu0 0.0
    %318 = vmatprep.subr.mxu0 0.0
    %319 = vmatpush2.msra.mxu0 0.0
    %320 = vmatprep.subr.mxu0 0.0
    %321 = vmatpush2.msra.mxu0 0.0
    %322 = vmatprep.subr.mxu0 0.0
    %323 = vmatpush2.msra.mxu0 0.0
    %324 = vmatprep.subr.mxu0 0.0
    %325 = vmatpush2.msra.mxu0 0.0
    %326 = vmatprep.subr.mxu0 0.0
    %327 = vmatpush2.msra.mxu0 0.0
    %328 = vmatprep.subr.mxu0 0.0
    %329 = vmatpush2.msra.mxu0 0.0
    %330 = vmatprep.subr.mxu0 0.0
    %331 = vmatpush2.msra.mxu0 0.0
    %332 = vmatprep.subr.mxu0 0.0
    %333 = vmatpush2.msra.mxu0 0.0
    %334 = vmatprep.subr.mxu0 0.0
    %335 = vmatpush2.msra.mxu0 0.0
    %336 = vmatprep.mubr.f32.mxu0 0.0
    %337 = vmatmul.mubr.f32.gmra.mxu0 %v270
    %v338 = vpop.f32.mrf.mxu0
    %v339 = vadd.f32 0.0, %v338
    %v340 = vpop.f32.mrf.mxu0
    %341 = vdwg.mxu0
    %v342 = vadd.f32 %v266, %v339
    %v343 = vmul.f32 %v342, %v38
    %v344 = vxor.u32 %v343, 2147483648
    %v345 = vmul.f32 %v344, 1.442695
    %v346 = vpow.pop %v345
    %v347 = vadd.f32 %v346, 1.0
    %v348 = vrcp.pop %v347
    %v349 = vmul.f32 1.0, %v348
    %v350 = vmul.f32 %v349, %v38
    %v351 = vadd.f32 %v350, %v39
    %v352 = vmul.f32 %v351, %v264
    %354 = vrot.lane.b32.xlu0 %v351, 64
    %v355 = vpop.permute.xlu0 %354
    %v357 = vmul.f32 %v351, %v355
    %359 = vrot.lane.b32.xlu0 %v357, 32
    %v360 = vpop.permute.xlu0 %359
    %v362 = vadd.f32 %v352, %v360
    %v363 = vtanh.pop %v362
    %365 = vrot.lane.b32.xlu0 %v363, 64
    %v366 = vpop.permute.xlu0 %365
    %v368 = vmul.f32 %v351, %v366
    %s369 = scalar_lea.vmem %s1, 16
    %v370 = vld [vmem:[%s369] sm:$0xff]
    %vm371 = vcmp.gt.f32.partialorder %v370, 0.0
    %v372 = vsel %vm371, 1, 0
    %373 = vset.pattern.permute.xlu0 0
    %374 = vperm.xlu0 %373, %v372
    %v375 = vpop.permute.xlu0 %374
    %vm376 = vcmp.eq.s32.totalorder %v375, 1
    %v377 = vsel %vm376, %v368, %v263
    %v378 = vsel %vm376, %v362, %v264
    %s379 = scalar_lea.vmem %s0, 24
    %v380 = vld [vmem:[%s379] sm:$0xff]
    %382 = vrot.lane.b32.xlu0 %v377, 32
    %v383 = vpop.permute.xlu0 %382
    %v384 = vsel %vm41, %v383, 0
    %386 = vmatprep.subr.mxu0 0.0
    %387 = vmatpush1.msra.mxu0 0.0
    %388 = vmatprep.subr.mxu0 0.0
    %389 = vmatpush1.msra.mxu0 0.0
    %390 = vmatprep.subr.mxu0 0.0
    %391 = vmatpush1.msra.mxu0 0.0
    %392 = vmatprep.subr.mxu0 0.0
    %393 = vmatpush1.msra.mxu0 0.0
    %394 = vmatprep.subr.mxu0 0.0
    %395 = vmatpush1.msra.mxu0 0.0
    %396 = vmatprep.subr.mxu0 0.0
    %397 = vmatpush1.msra.mxu0 0.0
    %398 = vmatprep.subr.mxu0 0.0
    %399 = vmatpush1.msra.mxu0 0.0
    %400 = vmatprep.subr.mxu0 0.0
    %401 = vmatpush1.msra.mxu0 0.0
    %402 = vmatprep.subr.mxu0 0.0
    %403 = vmatpush1.msra.mxu0 0.0
    %404 = vmatprep.subr.mxu0 0.0
    %405 = vmatpush1.msra.mxu0 0.0
    %406 = vmatprep.subr.mxu0 0.0
    %407 = vmatpush1.msra.mxu0 0.0
    %408 = vmatprep.subr.mxu0 0.0
    %409 = vmatpush1.msra.mxu0 0.0
    %410 = vmatprep.subr.mxu0 0.0
    %411 = vmatpush1.msra.mxu0 %v32
    %412 = vmatprep.subr.mxu0 0.0
    %413 = vmatpush1.msra.mxu0 %v31
    %414 = vmatprep.subr.mxu0 0.0
    %415 = vmatpush1.msra.mxu0 %v30
    %416 = vmatprep.subr.mxu0 0.0
    %417 = vmatpush1.msra.mxu0 %v29
    %418 = vmatprep.subr.mxu0 0.0
    %419 = vmatpush2.msra.mxu0 0.0
    %420 = vmatprep.subr.mxu0 0.0
    %421 = vmatpush2.msra.mxu0 0.0
    %422 = vmatprep.subr.mxu0 0.0
    %423 = vmatpush2.msra.mxu0 0.0
    %424 = vmatprep.subr.mxu0 0.0
    %425 = vmatpush2.msra.mxu0 0.0
    %426 = vmatprep.subr.mxu0 0.0
    %427 = vmatpush2.msra.mxu0 0.0
    %428 = vmatprep.subr.mxu0 0.0
    %429 = vmatpush2.msra.mxu0 0.0
    %430 = vmatprep.subr.mxu0 0.0
    %431 = vmatpush2.msra.mxu0 0.0
    %432 = vmatprep.subr.mxu0 0.0
    %433 = vmatpush2.msra.mxu0 0.0
    %434 = vmatprep.subr.mxu0 0.0
    %435 = vmatpush2.msra.mxu0 0.0
    %436 = vmatprep.subr.mxu0 0.0
    %437 = vmatpush2.msra.mxu0 0.0
    %438 = vmatprep.subr.mxu0 0.0
    %439 = vmatpush2.msra.mxu0 0.0
    %440 = vmatprep.subr.mxu0 0.0
    %441 = vmatpush2.msra.mxu0 0.0
    %442 = vmatprep.subr.mxu0 0.0
    %443 = vmatpush2.msra.mxu0 0.0
    %444 = vmatprep.subr.mxu0 0.0
    %445 = vmatpush2.msra.mxu0 0.0
    %446 = vmatprep.subr.mxu0 0.0
    %447 = vmatpush2.msra.mxu0 0.0
    %448 = vmatprep.subr.mxu0 0.0
    %449 = vmatpush2.msra.mxu0 0.0
    %450 = vmatprep.mubr.f32.mxu0 0.0
    %451 = vmatmul.mubr.f32.gmra.mxu0 %v384
    %v452 = vpop.f32.mrf.mxu0
    %v453 = vadd.f32 0.0, %v452
    %v454 = vpop.f32.mrf.mxu0
    %455 = vdwg.mxu0
    %v456 = vadd.f32 %v380, %v453
    %v457 = vmul.f32 %v456, %v38
    %v458 = vxor.u32 %v457, 2147483648
    %v459 = vmul.f32 %v458, 1.442695
    %v460 = vpow.pop %v459
    %v461 = vadd.f32 %v460, 1.0
    %v462 = vrcp.pop %v461
    %v463 = vmul.f32 1.0, %v462
    %v464 = vmul.f32 %v463, %v38
    %v465 = vadd.f32 %v464, %v39
    %v466 = vmul.f32 %v465, %v378
    %468 = vrot.lane.b32.xlu0 %v465, 64
    %v469 = vpop.permute.xlu0 %468
    %v471 = vmul.f32 %v465, %v469
    %473 = vrot.lane.b32.xlu0 %v471, 32
    %v474 = vpop.permute.xlu0 %473
    %v476 = vadd.f32 %v466, %v474
    %v477 = vtanh.pop %v476
    %479 = vrot.lane.b32.xlu0 %v477, 64
    %v480 = vpop.permute.xlu0 %479
    %v482 = vmul.f32 %v465, %v480
    %s483 = scalar_lea.vmem %s1, 24
    %v484 = vld [vmem:[%s483] sm:$0xff]
    %vm485 = vcmp.gt.f32.partialorder %v484, 0.0
    %v486 = vsel %vm485, 1, 0
    %487 = vset.pattern.permute.xlu0 0
    %488 = vperm.xlu0 %487, %v486
    %v489 = vpop.permute.xlu0 %488
    %vm490 = vcmp.eq.s32.totalorder %v489, 1
    %v491 = vsel %vm490, %v482, %v377
    %v492 = vsel %vm490, %v476, %v378
    %s493 = scalar_lea.vmem %s0, 32
    %v494 = vld [vmem:[%s493] sm:$0xff]
    %496 = vrot.lane.b32.xlu0 %v491, 32
    %v497 = vpop.permute.xlu0 %496
    %v498 = vsel %vm41, %v497, 0
    %500 = vmatprep.subr.mxu0 0.0
    %501 = vmatpush1.msra.mxu0 0.0
    %502 = vmatprep.subr.mxu0 0.0
    %503 = vmatpush1.msra.mxu0 0.0
    %504 = vmatprep.subr.mxu0 0.0
    %505 = vmatpush1.msra.mxu0 0.0
    %506 = vmatprep.subr.mxu0 0.0
    %507 = vmatpush1.msra.mxu0 0.0
    %508 = vmatprep.subr.mxu0 0.0
    %509 = vmatpush1.msra.mxu0 0.0
    %510 = vmatprep.subr.mxu0 0.0
    %511 = vmatpush1.msra.mxu0 0.0
    %512 = vmatprep.subr.mxu0 0.0
    %513 = vmatpush1.msra.mxu0 0.0
    %514 = vmatprep.subr.mxu0 0.0
    %515 = vmatpush1.msra.mxu0 0.0
    %516 = vmatprep.subr.mxu0 0.0
    %517 = vmatpush1.msra.mxu0 0.0
    %518 = vmatprep.subr.mxu0 0.0
    %519 = vmatpush1.msra.mxu0 0.0
    %520 = vmatprep.subr.mxu0 0.0
    %521 = vmatpush1.msra.mxu0 0.0
    %522 = vmatprep.subr.mxu0 0.0
    %523 = vmatpush1.msra.mxu0 0.0
    %524 = vmatprep.subr.mxu0 0.0
    %525 = vmatpush1.msra.mxu0 %v32
    %526 = vmatprep.subr.mxu0 0.0
    %527 = vmatpush1.msra.mxu0 %v31
    %528 = vmatprep.subr.mxu0 0.0
    %529 = vmatpush1.msra.mxu0 %v30
    %530 = vmatprep.subr.mxu0 0.0
    %531 = vmatpush1.msra.mxu0 %v29
    %532 = vmatprep.subr.mxu0 0.0
    %533 = vmatpush2.msra.mxu0 0.0
    %534 = vmatprep.subr.mxu0 0.0
    %535 = vmatpush2.msra.mxu0 0.0
    %536 = vmatprep.subr.mxu0 0.0
    %537 = vmatpush2.msra.mxu0 0.0
    %538 = vmatprep.subr.mxu0 0.0
    %539 = vmatpush2.msra.mxu0 0.0
    %540 = vmatprep.subr.mxu0 0.0
    %541 = vmatpush2.msra.mxu0 0.0
    %542 = vmatprep.subr.mxu0 0.0
    %543 = vmatpush2.msra.mxu0 0.0
    %544 = vmatprep.subr.mxu0 0.0
    %545 = vmatpush2.msra.mxu0 0.0
    %546 = vmatprep.subr.mxu0 0.0
    %547 = vmatpush2.msra.mxu0 0.0
    %548 = vmatprep.subr.mxu0 0.0
    %549 = vmatpush2.msra.mxu0 0.0
    %550 = vmatprep.subr.mxu0 0.0
    %551 = vmatpush2.msra.mxu0 0.0
    %552 = vmatprep.subr.mxu0 0.0
    %553 = vmatpush2.msra.mxu0 0.0
    %554 = vmatprep.subr.mxu0 0.0
    %555 = vmatpush2.msra.mxu0 0.0
    %556 = vmatprep.subr.mxu0 0.0
    %557 = vmatpush2.msra.mxu0 0.0
    %558 = vmatprep.subr.mxu0 0.0
    %559 = vmatpush2.msra.mxu0 0.0
    %560 = vmatprep.subr.mxu0 0.0
    %561 = vmatpush2.msra.mxu0 0.0
    %562 = vmatprep.subr.mxu0 0.0
    %563 = vmatpush2.msra.mxu0 0.0
    %564 = vmatprep.mubr.f32.mxu0 0.0
    %565 = vmatmul.mubr.f32.gmra.mxu0 %v498
    %v566 = vpop.f32.mrf.mxu0
    %v567 = vadd.f32 0.0, %v566
    %v568 = vpop.f32.mrf.mxu0
    %569 = vdwg.mxu0
    %v570 = vadd.f32 %v494, %v567
    %v571 = vmul.f32 %v570, %v38
    %v572 = vxor.u32 %v571, 2147483648
    %v573 = vmul.f32 %v572, 1.442695
    %v574 = vpow.pop %v573
    %v575 = vadd.f32 %v574, 1.0
    %v576 = vrcp.pop %v575
    %v577 = vmul.f32 1.0, %v576
    %v578 = vmul.f32 %v577, %v38
    %v579 = vadd.f32 %v578, %v39
    %v580 = vmul.f32 %v579, %v492
    %582 = vrot.lane.b32.xlu0 %v579, 64
    %v583 = vpop.permute.xlu0 %582
    %v585 = vmul.f32 %v579, %v583
    %587 = vrot.lane.b32.xlu0 %v585, 32
    %v588 = vpop.permute.xlu0 %587
    %v590 = vadd.f32 %v580, %v588
    %v591 = vtanh.pop %v590
    %593 = vrot.lane.b32.xlu0 %v591, 64
    %v594 = vpop.permute.xlu0 %593
    %v596 = vmul.f32 %v579, %v594
    %s597 = scalar_lea.vmem %s1, 32
    %v598 = vld [vmem:[%s597] sm:$0xff]
    %vm599 = vcmp.gt.f32.partialorder %v598, 0.0
    %v600 = vsel %vm599, 1, 0
    %601 = vset.pattern.permute.xlu0 0
    %602 = vperm.xlu0 %601, %v600
    %v603 = vpop.permute.xlu0 %602
    %vm604 = vcmp.eq.s32.totalorder %v603, 1
    %v605 = vsel %vm604, %v596, %v491
    %v606 = vsel %vm604, %v590, %v492
    %s607 = scalar_lea.vmem %s0, 40
    %v608 = vld [vmem:[%s607] sm:$0xff]
    %610 = vrot.lane.b32.xlu0 %v605, 32
    %v611 = vpop.permute.xlu0 %610
    %v612 = vsel %vm41, %v611, 0
    %614 = vmatprep.subr.mxu0 0.0
    %615 = vmatpush1.msra.mxu0 0.0
    %616 = vmatprep.subr.mxu0 0.0
    %617 = vmatpush1.msra.mxu0 0.0
    %618 = vmatprep.subr.mxu0 0.0
    %619 = vmatpush1.msra.mxu0 0.0
    %620 = vmatprep.subr.mxu0 0.0
    %621 = vmatpush1.msra.mxu0 0.0
    %622 = vmatprep.subr.mxu0 0.0
    %623 = vmatpush1.msra.mxu0 0.0
    %624 = vmatprep.subr.mxu0 0.0
    %625 = vmatpush1.msra.mxu0 0.0
    %626 = vmatprep.subr.mxu0 0.0
    %627 = vmatpush1.msra.mxu0 0.0
    %628 = vmatprep.subr.mxu0 0.0
    %629 = vmatpush1.msra.mxu0 0.0
    %630 = vmatprep.subr.mxu0 0.0
    %631 = vmatpush1.msra.mxu0 0.0
    %632 = vmatprep.subr.mxu0 0.0
    %633 = vmatpush1.msra.mxu0 0.0
    %634 = vmatprep.subr.mxu0 0.0
    %635 = vmatpush1.msra.mxu0 0.0
    %636 = vmatprep.subr.mxu0 0.0
    %637 = vmatpush1.msra.mxu0 0.0
    %638 = vmatprep.subr.mxu0 0.0
    %639 = vmatpush1.msra.mxu0 %v32
    %640 = vmatprep.subr.mxu0 0.0
    %641 = vmatpush1.msra.mxu0 %v31
    %642 = vmatprep.subr.mxu0 0.0
    %643 = vmatpush1.msra.mxu0 %v30
    %644 = vmatprep.subr.mxu0 0.0
    %645 = vmatpush1.msra.mxu0 %v29
    %646 = vmatprep.subr.mxu0 0.0
    %647 = vmatpush2.msra.mxu0 0.0
    %648 = vmatprep.subr.mxu0 0.0
    %649 = vmatpush2.msra.mxu0 0.0
    %650 = vmatprep.subr.mxu0 0.0
    %651 = vmatpush2.msra.mxu0 0.0
    %652 = vmatprep.subr.mxu0 0.0
    %653 = vmatpush2.msra.mxu0 0.0
    %654 = vmatprep.subr.mxu0 0.0
    %655 = vmatpush2.msra.mxu0 0.0
    %656 = vmatprep.subr.mxu0 0.0
    %657 = vmatpush2.msra.mxu0 0.0
    %658 = vmatprep.subr.mxu0 0.0
    %659 = vmatpush2.msra.mxu0 0.0
    %660 = vmatprep.subr.mxu0 0.0
    %661 = vmatpush2.msra.mxu0 0.0
    %662 = vmatprep.subr.mxu0 0.0
    %663 = vmatpush2.msra.mxu0 0.0
    %664 = vmatprep.subr.mxu0 0.0
    %665 = vmatpush2.msra.mxu0 0.0
    %666 = vmatprep.subr.mxu0 0.0
    %667 = vmatpush2.msra.mxu0 0.0
    %668 = vmatprep.subr.mxu0 0.0
    %669 = vmatpush2.msra.mxu0 0.0
    %670 = vmatprep.subr.mxu0 0.0
    %671 = vmatpush2.msra.mxu0 0.0
    %672 = vmatprep.subr.mxu0 0.0
    %673 = vmatpush2.msra.mxu0 0.0
    %674 = vmatprep.subr.mxu0 0.0
    %675 = vmatpush2.msra.mxu0 0.0
    %676 = vmatprep.subr.mxu0 0.0
    %677 = vmatpush2.msra.mxu0 0.0
    %678 = vmatprep.mubr.f32.mxu0 0.0
    %679 = vmatmul.mubr.f32.gmra.mxu0 %v612
    %v680 = vpop.f32.mrf.mxu0
    %v681 = vadd.f32 0.0, %v680
    %v682 = vpop.f32.mrf.mxu0
    %683 = vdwg.mxu0
    %v684 = vadd.f32 %v608, %v681
    %v685 = vmul.f32 %v684, %v38
    %v686 = vxor.u32 %v685, 2147483648
    %v687 = vmul.f32 %v686, 1.442695
    %v688 = vpow.pop %v687
    %v689 = vadd.f32 %v688, 1.0
    %v690 = vrcp.pop %v689
    %v691 = vmul.f32 1.0, %v690
    %v692 = vmul.f32 %v691, %v38
    %v693 = vadd.f32 %v692, %v39
    %v694 = vmul.f32 %v693, %v606
    %696 = vrot.lane.b32.xlu0 %v693, 64
    %v697 = vpop.permute.xlu0 %696
    %v699 = vmul.f32 %v693, %v697
    %701 = vrot.lane.b32.xlu0 %v699, 32
    %v702 = vpop.permute.xlu0 %701
    %v704 = vadd.f32 %v694, %v702
    %v705 = vtanh.pop %v704
    %707 = vrot.lane.b32.xlu0 %v705, 64
    %v708 = vpop.permute.xlu0 %707
    %v710 = vmul.f32 %v693, %v708
    %s711 = scalar_lea.vmem %s1, 40
    %v712 = vld [vmem:[%s711] sm:$0xff]
    %vm713 = vcmp.gt.f32.partialorder %v712, 0.0
    %v714 = vsel %vm713, 1, 0
    %715 = vset.pattern.permute.xlu0 0
    %716 = vperm.xlu0 %715, %v714
    %v717 = vpop.permute.xlu0 %716
    %vm718 = vcmp.eq.s32.totalorder %v717, 1
    %v719 = vsel %vm718, %v710, %v605
    %v720 = vsel %vm718, %v704, %v606
    %s721 = scalar_lea.vmem %s0, 48
    %v722 = vld [vmem:[%s721] sm:$0xff]
    %724 = vrot.lane.b32.xlu0 %v719, 32
    %v725 = vpop.permute.xlu0 %724
    %v726 = vsel %vm41, %v725, 0
    %728 = vmatprep.subr.mxu0 0.0
    %729 = vmatpush1.msra.mxu0 0.0
    %730 = vmatprep.subr.mxu0 0.0
    %731 = vmatpush1.msra.mxu0 0.0
    %732 = vmatprep.subr.mxu0 0.0
    %733 = vmatpush1.msra.mxu0 0.0
    %734 = vmatprep.subr.mxu0 0.0
    %735 = vmatpush1.msra.mxu0 0.0
    %736 = vmatprep.subr.mxu0 0.0
    %737 = vmatpush1.msra.mxu0 0.0
    %738 = vmatprep.subr.mxu0 0.0
    %739 = vmatpush1.msra.mxu0 0.0
    %740 = vmatprep.subr.mxu0 0.0
    %741 = vmatpush1.msra.mxu0 0.0
    %742 = vmatprep.subr.mxu0 0.0
    %743 = vmatpush1.msra.mxu0 0.0
    %744 = vmatprep.subr.mxu0 0.0
    %745 = vmatpush1.msra.mxu0 0.0
    %746 = vmatprep.subr.mxu0 0.0
    %747 = vmatpush1.msra.mxu0 0.0
    %748 = vmatprep.subr.mxu0 0.0
    %749 = vmatpush1.msra.mxu0 0.0
    %750 = vmatprep.subr.mxu0 0.0
    %751 = vmatpush1.msra.mxu0 0.0
    %752 = vmatprep.subr.mxu0 0.0
    %753 = vmatpush1.msra.mxu0 %v32
    %754 = vmatprep.subr.mxu0 0.0
    %755 = vmatpush1.msra.mxu0 %v31
    %756 = vmatprep.subr.mxu0 0.0
    %757 = vmatpush1.msra.mxu0 %v30
    %758 = vmatprep.subr.mxu0 0.0
    %759 = vmatpush1.msra.mxu0 %v29
    %760 = vmatprep.subr.mxu0 0.0
    %761 = vmatpush2.msra.mxu0 0.0
    %762 = vmatprep.subr.mxu0 0.0
    %763 = vmatpush2.msra.mxu0 0.0
    %764 = vmatprep.subr.mxu0 0.0
    %765 = vmatpush2.msra.mxu0 0.0
    %766 = vmatprep.subr.mxu0 0.0
    %767 = vmatpush2.msra.mxu0 0.0
    %768 = vmatprep.subr.mxu0 0.0
    %769 = vmatpush2.msra.mxu0 0.0
    %770 = vmatprep.subr.mxu0 0.0
    %771 = vmatpush2.msra.mxu0 0.0
    %772 = vmatprep.subr.mxu0 0.0
    %773 = vmatpush2.msra.mxu0 0.0
    %774 = vmatprep.subr.mxu0 0.0
    %775 = vmatpush2.msra.mxu0 0.0
    %776 = vmatprep.subr.mxu0 0.0
    %777 = vmatpush2.msra.mxu0 0.0
    %778 = vmatprep.subr.mxu0 0.0
    %779 = vmatpush2.msra.mxu0 0.0
    %780 = vmatprep.subr.mxu0 0.0
    %781 = vmatpush2.msra.mxu0 0.0
    %782 = vmatprep.subr.mxu0 0.0
    %783 = vmatpush2.msra.mxu0 0.0
    %784 = vmatprep.subr.mxu0 0.0
    %785 = vmatpush2.msra.mxu0 0.0
    %786 = vmatprep.subr.mxu0 0.0
    %787 = vmatpush2.msra.mxu0 0.0
    %788 = vmatprep.subr.mxu0 0.0
    %789 = vmatpush2.msra.mxu0 0.0
    %790 = vmatprep.subr.mxu0 0.0
    %791 = vmatpush2.msra.mxu0 0.0
    %792 = vmatprep.mubr.f32.mxu0 0.0
    %793 = vmatmul.mubr.f32.gmra.mxu0 %v726
    %v794 = vpop.f32.mrf.mxu0
    %v795 = vadd.f32 0.0, %v794
    %v796 = vpop.f32.mrf.mxu0
    %797 = vdwg.mxu0
    %v798 = vadd.f32 %v722, %v795
    %v799 = vmul.f32 %v798, %v38
    %v800 = vxor.u32 %v799, 2147483648
    %v801 = vmul.f32 %v800, 1.442695
    %v802 = vpow.pop %v801
    %v803 = vadd.f32 %v802, 1.0
    %v804 = vrcp.pop %v803
    %v805 = vmul.f32 1.0, %v804
    %v806 = vmul.f32 %v805, %v38
    %v807 = vadd.f32 %v806, %v39
    %v808 = vmul.f32 %v807, %v720
    %810 = vrot.lane.b32.xlu0 %v807, 64
    %v811 = vpop.permute.xlu0 %810
    %v813 = vmul.f32 %v807, %v811
    %815 = vrot.lane.b32.xlu0 %v813, 32
    %v816 = vpop.permute.xlu0 %815
    %v818 = vadd.f32 %v808, %v816
    %v819 = vtanh.pop %v818
    %821 = vrot.lane.b32.xlu0 %v819, 64
    %v822 = vpop.permute.xlu0 %821
    %v824 = vmul.f32 %v807, %v822
    %s825 = scalar_lea.vmem %s1, 48
    %v826 = vld [vmem:[%s825] sm:$0xff]
    %vm827 = vcmp.gt.f32.partialorder %v826, 0.0
    %v828 = vsel %vm827, 1, 0
    %829 = vset.pattern.permute.xlu0 0
    %830 = vperm.xlu0 %829, %v828
    %v831 = vpop.permute.xlu0 %830
    %vm832 = vcmp.eq.s32.totalorder %v831, 1
    %v833 = vsel %vm832, %v824, %v719
    %v834 = vsel %vm832, %v818, %v720
    %s835 = scalar_lea.vmem %s0, 56
    %v836 = vld [vmem:[%s835] sm:$0xff]
    %838 = vrot.lane.b32.xlu0 %v833, 32
    %v839 = vpop.permute.xlu0 %838
    %v840 = vsel %vm41, %v839, 0
    %842 = vmatprep.subr.mxu0 0.0
    %843 = vmatpush1.msra.mxu0 0.0
    %844 = vmatprep.subr.mxu0 0.0
    %845 = vmatpush1.msra.mxu0 0.0
    %846 = vmatprep.subr.mxu0 0.0
    %847 = vmatpush1.msra.mxu0 0.0
    %848 = vmatprep.subr.mxu0 0.0
    %849 = vmatpush1.msra.mxu0 0.0
    %850 = vmatprep.subr.mxu0 0.0
    %851 = vmatpush1.msra.mxu0 0.0
    %852 = vmatprep.subr.mxu0 0.0
    %853 = vmatpush1.msra.mxu0 0.0
    %854 = vmatprep.subr.mxu0 0.0
    %855 = vmatpush1.msra.mxu0 0.0
    %856 = vmatprep.subr.mxu0 0.0
    %857 = vmatpush1.msra.mxu0 0.0
    %858 = vmatprep.subr.mxu0 0.0
    %859 = vmatpush1.msra.mxu0 0.0
    %860 = vmatprep.subr.mxu0 0.0
    %861 = vmatpush1.msra.mxu0 0.0
    %862 = vmatprep.subr.mxu0 0.0
    %863 = vmatpush1.msra.mxu0 0.0
    %864 = vmatprep.subr.mxu0 0.0
    %865 = vmatpush1.msra.mxu0 0.0
    %866 = vmatprep.subr.mxu0 0.0
    %867 = vmatpush1.msra.mxu0 %v32
    %868 = vmatprep.subr.mxu0 0.0
    %869 = vmatpush1.msra.mxu0 %v31
    %870 = vmatprep.subr.mxu0 0.0
    %871 = vmatpush1.msra.mxu0 %v30
    %872 = vmatprep.subr.mxu0 0.0
    %873 = vmatpush1.msra.mxu0 %v29
    %874 = vmatprep.subr.mxu0 0.0
    %875 = vmatpush2.msra.mxu0 0.0
    %876 = vmatprep.subr.mxu0 0.0
    %877 = vmatpush2.msra.mxu0 0.0
    %878 = vmatprep.subr.mxu0 0.0
    %879 = vmatpush2.msra.mxu0 0.0
    %880 = vmatprep.subr.mxu0 0.0
    %881 = vmatpush2.msra.mxu0 0.0
    %882 = vmatprep.subr.mxu0 0.0
    %883 = vmatpush2.msra.mxu0 0.0
    %884 = vmatprep.subr.mxu0 0.0
    %885 = vmatpush2.msra.mxu0 0.0
    %886 = vmatprep.subr.mxu0 0.0
    %887 = vmatpush2.msra.mxu0 0.0
    %888 = vmatprep.subr.mxu0 0.0
    %889 = vmatpush2.msra.mxu0 0.0
    %890 = vmatprep.subr.mxu0 0.0
    %891 = vmatpush2.msra.mxu0 0.0
    %892 = vmatprep.subr.mxu0 0.0
    %893 = vmatpush2.msra.mxu0 0.0
    %894 = vmatprep.subr.mxu0 0.0
    %895 = vmatpush2.msra.mxu0 0.0
    %896 = vmatprep.subr.mxu0 0.0
    %897 = vmatpush2.msra.mxu0 0.0
    %898 = vmatprep.subr.mxu0 0.0
    %899 = vmatpush2.msra.mxu0 0.0
    %900 = vmatprep.subr.mxu0 0.0
    %901 = vmatpush2.msra.mxu0 0.0
    %902 = vmatprep.subr.mxu0 0.0
    %903 = vmatpush2.msra.mxu0 0.0
    %904 = vmatprep.subr.mxu0 0.0
    %905 = vmatpush2.msra.mxu0 0.0
    %906 = vmatprep.mubr.f32.mxu0 0.0
    %907 = vmatmul.mubr.f32.gmra.mxu0 %v840
    %v908 = vpop.f32.mrf.mxu0
    %v909 = vadd.f32 0.0, %v908
    %v910 = vpop.f32.mrf.mxu0
    %911 = vdwg.mxu0
    %v912 = vadd.f32 %v836, %v909
    %v913 = vmul.f32 %v912, %v38
    %v914 = vxor.u32 %v913, 2147483648
    %v915 = vmul.f32 %v914, 1.442695
    %v916 = vpow.pop %v915
    %v917 = vadd.f32 %v916, 1.0
    %v918 = vrcp.pop %v917
    %v919 = vmul.f32 1.0, %v918
    %v920 = vmul.f32 %v919, %v38
    %v921 = vadd.f32 %v920, %v39
    %v922 = vmul.f32 %v921, %v834
    %924 = vrot.lane.b32.xlu0 %v921, 64
    %v925 = vpop.permute.xlu0 %924
    %v927 = vmul.f32 %v921, %v925
    %929 = vrot.lane.b32.xlu0 %v927, 32
    %v930 = vpop.permute.xlu0 %929
    %v932 = vadd.f32 %v922, %v930
    %s933 = scalar_lea.vmem %s1, 56
    %v934 = vld [vmem:[%s933] sm:$0xff]
    %vm935 = vcmp.gt.f32.partialorder %v934, 0.0
    %v936 = vsel %vm935, 1, 0
    %937 = vset.pattern.permute.xlu0 0
    %938 = vperm.xlu0 %937, %v936
    %v939 = vpop.permute.xlu0 %938
    %vm940 = vcmp.eq.s32.totalorder %v939, 1
    %v941 = vsel %vm940, %v932, %v834
    %943 = vrot.lane.b32.xlu0 %v941, 96
    %v944 = vpop.permute.xlu0 %943
    %946 = vst.msk [vmem:[#allocation5] sm:$0xff] %vm41, %v944
    // Predicated region
    $region18: #{tpu_custom_call.1} parent=1 // pred_check
      _
    $region19: #{tpu_custom_call.1} parent=1 // pred_check_branch
      %948 = sbr.rel (0) target = $region21
    $region20: #{tpu_custom_call.1} parent=1 // pred_region
      %s950 = ssub.s32 128, 128
      %951 = vsyncadd [#allocation4], %s950
      %s953 = sshll.u32 [#allocation5], 4
      %s954 = int_to_ptr.vmem [resolvable:$true] %s953
      %956 = dma.vmem_to_hbm [thread:$0]  %s954, 128, %s3, [#allocation4]
    $region21: #{tpu_custom_call.1} parent=1 // pred_fallthru
      _
    // Predicated region
    $region22: #{tpu_custom_call.1} parent=1 // pred_check
      _
    $region23: #{tpu_custom_call.1} parent=1 // pred_check_branch
      %958 = sbr.rel (0) target = $region25
    $region24: #{tpu_custom_call.1} parent=1 // pred_region
      %959 = dma.done [#allocation4], 128
    $region25: #{tpu_custom_call.1} parent=1 // pred_fallthru
      _
    %960 = vsyncpa [#allocation3], 1
    %961 = vsyncpa [#allocation4], 1

</llo_original>
